<compile_context>
chip_gen: v5e
topology: v5e:2x2
jax: 0.10.0
libtpu: 0.0.40
codegen_flags: <defaults>
</compile_context>

<pallas_src>
import functools

import jax
import jax.numpy as jnp
from jax.experimental import pallas as pl
from jax.experimental.pallas import tpu as pltpu

_LANE = 128
_TM_CAP = 2048          # upper bound on the M tile (review: raise above 512)
_MIN_M_TILES = 2        # >= 2 grid steps so v7x's two TensorCores both work


def _round_up(x: int, m: int) -> int:
    return (x + m - 1) // m * m


def _cdiv(a: int, b: int) -> int:
    return -(-a // b)


def _sublane(dtype) -> int:
    # second-minor tiling multiple by itemsize (f32: 8, bf16: 16, int8/fp8: 32)
    return {4: 8, 2: 16, 1: 32}.get(jnp.dtype(dtype).itemsize, 8)


def _vmem_budget_and_limit() -> tuple:
    """Generation-scaled VMEM planning budget and scoped-vmem limit."""
    try:
        cap = int(pltpu.get_tpu_info().vmem_capacity_bytes)
        if cap <= 0:
            raise ValueError("bad vmem capacity")
    except Exception:
        # Interpret mode / older runtimes: assume the smallest part (v7x, 64 MiB/TC).
        cap = 64 * 1024 * 1024
    return cap // 2, (cap * 3) // 4


def _choose_grid_m(m: int, tm_max: int, sublane: int) -> tuple:
    """Pick (tm, n_tiles): tm <= tm_max, tm % sublane == 0, tm * n_tiles barely
    covers m (no near-full dead tile), and >= 2 tiles whenever m allows."""
    m_al = _round_up(max(m, 1), sublane)
    tm_max = max(sublane, (tm_max // sublane) * sublane)
    n_tiles = max(_cdiv(m_al, tm_max), _MIN_M_TILES)
    n_tiles = min(n_tiles, m_al // sublane)      # cannot split below sublane rows
    tm = _round_up(_cdiv(m_al, n_tiles), sublane)
    n_tiles = _cdiv(m_al, tm)
    return tm, n_tiles


def _fused_transfer_kernel(x_ref, w_ref, start_ref, end_ref, trans_ref):
    """[tm, Dp] x [Dp, 3*Dp] on the MXU; lane-aligned (128-multiple) slices of
    the f32 accumulator are stored directly to the three lane-dense outputs."""
    dp = start_ref.shape[-1]
    acc = jnp.dot(x_ref[...], w_ref[...], preferred_element_type=jnp.float32)
    start_ref[...] = acc[:, 0 * dp:1 * dp].astype(start_ref.dtype)
    end_ref[...] = acc[:, 1 * dp:2 * dp].astype(end_ref.dtype)
    trans_ref[...] = acc[:, 2 * dp:3 * dp].astype(trans_ref.dtype)


def _split_transfer_kernel(x_ref, w_ref, out_ref):
    """Large-D fallback: grid axis j selects one of the three [Dp, Dp]
    projections; output is the stacked [3, Mp, Dp] array."""
    out_ref[0] = jnp.dot(
        x_ref[...], w_ref[0], preferred_element_type=jnp.float32
    ).astype(out_ref.dtype)


def label_reps_transfer(label_reps, w_start, w_end, w_trans, *,
                        force_kernel: bool = False):
    """label_reps: [B, num_tags, D] -> (start, end, trans), each [B, num_tags, D]."""
    B, T, D = label_reps.shape
    M = B * T
    out_dtype = label_reps.dtype
    # Both the kernel and the XLA fallback compute in the same promoted dtype so
    # the two code paths agree numerically (review correctness concern #1).
    compute_dtype = jnp.promote_types(
        out_dtype, jnp.result_type(w_start, w_end, w_trans))

    def _xla_path():
        x = label_reps.astype(compute_dtype)
        outs = [jnp.einsum("btd,de->bte", x, w.astype(compute_dtype))
                for w in (w_start, w_end, w_trans)]
        return tuple(o.astype(out_dtype) for o in outs)

    # Tiny problems: Pallas launch/per-step overhead dwarfs the whole compute.
    if not force_kernel and (M < 256 or D < _LANE):
        return _xla_path()

    budget, vmem_limit = _vmem_budget_and_limit()
    ci = jnp.dtype(compute_dtype).itemsize
    oi = jnp.dtype(out_dtype).itemsize
    sub = max(_sublane(compute_dtype), _sublane(out_dtype))

    Dp = _round_up(D, _LANE)
    fused_w_bytes = Dp * 3 * Dp * ci        # single-buffered (pl.Buffered(1))
    split_w_bytes = 2 * Dp * Dp * ci        # default double-buffered
    use_fused = fused_w_bytes <= budget // 2
    use_split = (not use_fused) and split_w_bytes <= budget // 2
    if not (use_fused or use_split):
        # TODO(synk): K-tiled accumulator kernel for very large embed_dim.
        return _xla_path()

    if use_fused:
        per_row = 2 * Dp * ci + 2 * 3 * Dp * oi   # dbl-buf x + three dbl-buf outs
        w_bytes = fused_w_bytes
    else:
        per_row = 2 * Dp * ci + 2 * Dp * oi       # dbl-buf x + one dbl-buf out
        w_bytes = split_w_bytes
    tm_max = min(_TM_CAP, max(sub, (budget - w_bytes) // per_row))
    tm, n_tiles = _choose_grid_m(M, tm_max, sub)
    Mp = tm * n_tiles

    # Flatten and zero-pad x to [Mp, Dp]; zero K-padding contributes nothing.
    x = jnp.pad(label_reps.reshape(M, D).astype(compute_dtype),
                ((0, Mp - M), (0, Dp - D)))

    def _pad_w(w):
        return jnp.pad(w.astype(compute_dtype), ((0, Dp - D), (0, Dp - D)))

    # NOTE: under jax.jit with fixed parameters the weight packing below is
    # hoisted / constant-folded; long-lived callers can also precompute the
    # packed weight once per parameter set and close over it.
    cost = pl.CostEstimate(
        flops=2 * Mp * Dp * 3 * Dp,
        transcendentals=0,
        bytes_accessed=Mp * Dp * ci + 3 * Dp * Dp * ci + 3 * Mp * Dp * oi,
    )

    if use_fused:
        w_cat = jnp.concatenate(
            [_pad_w(w_start), _pad_w(w_end), _pad_w(w_trans)], axis=1)
        out_struct = jax.ShapeDtypeStruct((Mp, Dp), out_dtype)
        out_spec = pl.BlockSpec((tm, Dp), lambda i: (i, 0))
        start, end, trans = pl.pallas_call(
            _fused_transfer_kernel,
            out_shape=(out_struct, out_struct, out_struct),
            grid_spec=pl.GridSpec(
                grid=(n_tiles,),
                in_specs=[
                    # x tile marches down M; double-buffered by the pipeline.
                    pl.BlockSpec((tm, Dp), lambda i: (i, 0)),
                    # Resident fused weight: constant index => fetched once;
                    # single-buffered to halve its VMEM footprint.
                    pl.BlockSpec((Dp, 3 * Dp), lambda i: (0, 0),
                                 pipeline_mode=pl.Buffered(1)),
                ],
                out_specs=(out_spec, out_spec, out_spec),
            ),
            compiler_params=pltpu.CompilerParams(
                dimension_semantics=("parallel",),   # megacore shards M
                vmem_limit_bytes=vmem_limit,
            ),
            cost_estimate=cost,
        )(x, w_cat)
    else:
        w_stack = jnp.stack(
            [_pad_w(w_start), _pad_w(w_end), _pad_w(w_trans)], axis=0)
        out = pl.pallas_call(
            _split_transfer_kernel,
            out_shape=jax.ShapeDtypeStruct((3, Mp, Dp), out_dtype),
            grid_spec=pl.GridSpec(
                grid=(3, n_tiles),
                in_specs=[
                    pl.BlockSpec((tm, Dp), lambda j, i: (i, 0)),
                    # Weight block changes only with j (slow axis): 3 fetches.
                    pl.BlockSpec((1, Dp, Dp), lambda j, i: (j, 0, 0)),
                ],
                out_specs=pl.BlockSpec((1, tm, Dp), lambda j, i: (j, i, 0)),
            ),
            compiler_params=pltpu.CompilerParams(
                dimension_semantics=("arbitrary", "parallel"),
                vmem_limit_bytes=vmem_limit,
            ),
            cost_estimate=cost,
        )(x, w_stack)
        start, end, trans = out[0], out[1], out[2]

    def _unpad(y):
        return y[:M, :D].reshape(B, T, D)

    return _unpad(start), _unpad(end), _unpad(trans)


if __name__ == "__main__":
    # Small shapes consistent with the module: num_tags tags, embed_dim-wide reps.
    batch = 2
    num_tags = 8
    embed_dim = 32

    key = jax.random.PRNGKey(0)
    k_x, k_ws, k_we, k_wt = jax.random.split(key, 4)

    label_reps = jax.random.normal(k_x, (batch, num_tags, embed_dim),
                                   dtype=jnp.float32)
    # Deterministic synthetic parameters (no checkpoint load).
    w_start = jax.random.normal(k_ws, (embed_dim, embed_dim),
                                dtype=jnp.float32) / jnp.sqrt(embed_dim)
    w_end = jax.random.normal(k_we, (embed_dim, embed_dim),
                              dtype=jnp.float32) / jnp.sqrt(embed_dim)
    w_trans = jax.random.normal(k_wt, (embed_dim, embed_dim),
                                dtype=jnp.float32) / jnp.sqrt(embed_dim)

    # Force the Pallas path so the kernel is exercised even at tiny demo shapes
    # (production callers would leave the size gate in charge).
    fwd = jax.jit(functools.partial(label_reps_transfer, force_kernel=True))
    start_reps, end_reps, trans_reps = jax.block_until_ready(
        fwd(label_reps, w_start, w_end, w_trans))

    # Pure-JAX reference check.
    ref_start = jnp.einsum("btd,de->bte", label_reps, w_start)
    ref_end = jnp.einsum("btd,de->bte", label_reps, w_end)
    ref_trans = jnp.einsum("btd,de->bte", label_reps, w_trans)
    assert jnp.allclose(start_reps, ref_start, atol=1e-5, rtol=1e-5)
    assert jnp.allclose(end_reps, ref_end, atol=1e-5, rtol=1e-5)
    assert jnp.allclose(trans_reps, ref_trans, atol=1e-5, rtol=1e-5)

    print("KERNEL_OK")
</pallas_src>

<mosaic_0001>
module attributes {stable_mosaic.version = 11 : i64} {
  func.func @_fused_transfer_kernel(%arg0: i32, %arg1: memref<8x128xf32, #tpu.memory_space<vmem>>, %arg2: memref<128x384xf32, #tpu.memory_space<vmem>>, %arg3: memref<8x128xf32, #tpu.memory_space<vmem>>, %arg4: memref<8x128xf32, #tpu.memory_space<vmem>>, %arg5: memref<8x128xf32, #tpu.memory_space<vmem>>) attributes {dimension_semantics = [#tpu.dimension_semantics<parallel>], iteration_bounds = array<i64: 2>, scalar_prefetch = 0 : i64, scratch_operands = 0 : i64, tpu.core_type = #tpu.core_type<tc>, window_params = [{transform_indices = @transform_0, window_bounds = array<i64: 8, 128>}, {pipeline_mode = #tpu.pipeline_mode<synchronous>, transform_indices = @transform_1, window_bounds = array<i64: 128, 384>}, {transform_indices = @transform_2, window_bounds = array<i64: 8, 128>}, {transform_indices = @transform_3, window_bounds = array<i64: 8, 128>}, {transform_indices = @transform_4, window_bounds = array<i64: 8, 128>}]} {
    %c0 = arith.constant 0 : index
    %c0_0 = arith.constant 0 : index
    %0 = vector.load %arg1[%c0, %c0_0] : memref<8x128xf32, #tpu.memory_space<vmem>>, vector<8x128xf32>
    %c0_1 = arith.constant 0 : index
    %c0_2 = arith.constant 0 : index
    %1 = vector.load %arg2[%c0_1, %c0_2] : memref<128x384xf32, #tpu.memory_space<vmem>>, vector<128x384xf32>
    %cst = arith.constant dense<0.000000e+00> : vector<8x384xf32>
    %2 = tpu.matmul %0, %1, %cst {dimension_numbers = #tpu.dot_dimension_numbers<[1], [0], [0], [1], [0, 0, 1, 1], [], []>} : vector<8x128xf32>, vector<128x384xf32>, vector<8x384xf32> -> vector<8x384xf32>
    %3 = vector.extract_strided_slice %2 {offsets = [0, 0], sizes = [8, 128], strides = [1, 1]} : vector<8x384xf32> to vector<8x128xf32>
    %c0_3 = arith.constant 0 : index
    %c0_4 = arith.constant 0 : index
    %4 = vector.load %arg3[%c0_3, %c0_4] : memref<8x128xf32, #tpu.memory_space<vmem>>, vector<8x128xf32>
    tpu.vector_store %arg3[%c0_3, %c0_4], %3 {strides = array<i32>} : memref<8x128xf32, #tpu.memory_space<vmem>>, vector<8x128xf32>,
    %5 = vector.extract_strided_slice %2 {offsets = [0, 128], sizes = [8, 128], strides = [1, 1]} : vector<8x384xf32> to vector<8x128xf32>
    %c0_5 = arith.constant 0 : index
    %c0_6 = arith.constant 0 : index
    %6 = vector.load %arg4[%c0_5, %c0_6] : memref<8x128xf32, #tpu.memory_space<vmem>>, vector<8x128xf32>
    tpu.vector_store %arg4[%c0_5, %c0_6], %5 {strides = array<i32>} : memref<8x128xf32, #tpu.memory_space<vmem>>, vector<8x128xf32>,
    %7 = vector.extract_strided_slice %2 {offsets = [0, 256], sizes = [8, 128], strides = [1, 1]} : vector<8x384xf32> to vector<8x128xf32>
    %c0_7 = arith.constant 0 : index
    %c0_8 = arith.constant 0 : index
    %8 = vector.load %arg5[%c0_7, %c0_8] : memref<8x128xf32, #tpu.memory_space<vmem>>, vector<8x128xf32>
    tpu.vector_store %arg5[%c0_7, %c0_8], %7 {strides = array<i32>} : memref<8x128xf32, #tpu.memory_space<vmem>>, vector<8x128xf32>,
    return
  }
  func.func @transform_0(%arg0: i32) -> (i32, i32) {
    %c0_i32 = arith.constant 0 : i32
    %c0_i32_0 = arith.constant 0 : i32
    return %arg0, %c0_i32 : i32, i32
  }
  func.func @transform_1(%arg0: i32) -> (i32, i32) {
    %c0_i32 = arith.constant 0 : i32
    %c0_i32_0 = arith.constant 0 : i32
    %c0_i32_1 = arith.constant 0 : i32
    return %c0_i32, %c0_i32_0 : i32, i32
  }
  func.func @transform_2(%arg0: i32) -> (i32, i32) {
    %c0_i32 = arith.constant 0 : i32
    %c0_i32_0 = arith.constant 0 : i32
    return %arg0, %c0_i32 : i32, i32
  }
  func.func @transform_3(%arg0: i32) -> (i32, i32) {
    %c0_i32 = arith.constant 0 : i32
    %c0_i32_0 = arith.constant 0 : i32
    return %arg0, %c0_i32 : i32, i32
  }
  func.func @transform_4(%arg0: i32) -> (i32, i32) {
    %c0_i32 = arith.constant 0 : i32
    %c0_i32_0 = arith.constant 0 : i32
    return %arg0, %c0_i32 : i32, i32
  }
}

</mosaic_0001>

<llo_original>
// kernel: label_reps_transfer.1
$region0: #{label_reps_transfer.1}
  #allocation0 [shape = 'u32[]', space=smem, size = 0x4, offset = 0x4, fixed_abs, tag = 'smem constant byte address 0x4 - core index']
  #allocation1 [shape = 'u32[72,128]{1,0:T(1,128)}', space=vmem, size = 0x9000, scoped, tag = 'internal scratch']
  %s0 = inlined_call_operand.vmem [shape: f32[16,128], index: 0, kind: input, shape index: {}]
  %s1 = inlined_call_operand.vmem [shape: f32[128,384], index: 1, kind: input, shape index: {}]
  %s2 = inlined_call_operand.vmem [shape: f32[16,128], index: 2, kind: output, shape index: {0}]
  %s3 = inlined_call_operand.vmem [shape: f32[16,128], index: 3, kind: output, shape index: {1}]
  %s4 = inlined_call_operand.vmem [shape: f32[16,128], index: 4, kind: output, shape index: {2}]
  %5 = xla_tuple %s2, %s3, %s4
  %s6 = sld [smem:[#allocation0]]
  $region57: #{label_reps_transfer.1} parent=0
    _
  %s8 = ssub.s32 1, %s6
  %s9 = scalar_select 0, %s8, %s6
  loop: start=0, step=1, limit=4
  $region2: #{label_reps_transfer.1} parent=0 // loop_pre_header
    _
  $region3: #{label_reps_transfer.1} parent=0 // loop_header
    %s11 = sphi 0, %s15
    %p12 = scmp.ge.s32.totalorder %s11, 4
    %s21 = sphi 0, %s23
    %s24 = sphi 0, %s21
    %s25 = sphi 0, %s24
    %s41 = sphi 0, %s25
    %s45 = sphi 0, %s45
    %s47 = sphi 0, %s45
    %s48 = sphi 0, %s47
    %s62 = sphi 0, %s48
    %s68 = sphi 0, %s70
    %s71 = sphi 0, %s68
    %s72 = sphi 0, %s71
    %s88 = sphi 0, %s72
    %s94 = sphi 0, %s96
    %s97 = sphi 0, %s94
    %s98 = sphi 0, %s97
    %s114 = sphi 0, %s98
    %s120 = sphi 0, %s122
    %s123 = sphi 0, %s120
    %s124 = sphi 0, %s123
    %s140 = sphi 0, %s124
  $region4: #{label_reps_transfer.1} parent=0 // loop_header_branch
    %14 = sbr.rel (%p12) target = $region8
  $region5: #{label_reps_transfer.1} parent=0 // loop_body
    %s16 = ssub.s32 %s11, 1
    %s17 = ssub.s32 %s11, 2
    %s18 = sadd.s32 %s11, 1
    %s19 = ssub.s32 %s11, %s18
    %p20 = scmp.eq.s32.totalorder %s19, 0
    %s22 = sadd.s32 %s21, 1
    %s23 = scalar_select %p20, %s21, %s22
    %p26 = pneg %p20
    %p27 = scmp.eq.s32.totalorder %s11, 1
    %p28 = por %p26, %p27
    %p29 = scmp.ne.s32.totalorder %s21, %s24
    %p30 = scmp.eq.s32.totalorder %s11, 0
    %p31 = por %p29, %p30
    %p32 = scmp.ne.s32.totalorder %s21, %s24
    %p33 = scmp.eq.s32.totalorder %s16, 1
    %p34 = por %p32, %p33
    %p35 = scmp.ne.s32.totalorder %s24, %s25
    %p36 = scmp.eq.s32.totalorder %s16, 0
    %p37 = por %p35, %p36
    %p38 = scmp.ne.s32.totalorder %s24, %s25
    %p39 = scmp.eq.s32.totalorder %s17, 1
    %p40 = por %p38, %p39
    %p42 = scmp.ne.s32.totalorder %s25, %s41
    %p43 = scmp.eq.s32.totalorder %s17, 0
    %p44 = por %p42, %p43
    %s46 = sadd.s32 %s45, 1
    %p49 = scmp.eq.s32.totalorder %s11, 1
    %p50 = scmp.ne.s32.totalorder %s45, %s47
    %p51 = scmp.eq.s32.totalorder %s11, 0
    %p52 = por %p50, %p51
    %p53 = scmp.ne.s32.totalorder %s45, %s47
    %p54 = scmp.eq.s32.totalorder %s16, 1
    %p55 = por %p53, %p54
    %p56 = scmp.ne.s32.totalorder %s47, %s48
    %p57 = scmp.eq.s32.totalorder %s16, 0
    %p58 = por %p56, %p57
    %p59 = scmp.ne.s32.totalorder %s47, %s48
    %p60 = scmp.eq.s32.totalorder %s17, 1
    %p61 = por %p59, %p60
    %p63 = scmp.ne.s32.totalorder %s48, %s62
    %p64 = scmp.eq.s32.totalorder %s17, 0
    %p65 = por %p63, %p64
    %s66 = ssub.s32 %s11, %s18
    %p67 = scmp.eq.s32.totalorder %s66, 0
    %s69 = sadd.s32 %s68, 1
    %s70 = scalar_select %p67, %s68, %s69
    %p73 = pneg %p67
    %p74 = scmp.eq.s32.totalorder %s11, 1
    %p75 = por %p73, %p74
    %p76 = scmp.ne.s32.totalorder %s68, %s71
    %p77 = scmp.eq.s32.totalorder %s11, 0
    %p78 = por %p76, %p77
    %p79 = scmp.ne.s32.totalorder %s68, %s71
    %p80 = scmp.eq.s32.totalorder %s16, 1
    %p81 = por %p79, %p80
    %p82 = scmp.ne.s32.totalorder %s71, %s72
    %p83 = scmp.eq.s32.totalorder %s16, 0
    %p84 = por %p82, %p83
    %p85 = scmp.ne.s32.totalorder %s71, %s72
    %p86 = scmp.eq.s32.totalorder %s17, 1
    %p87 = por %p85, %p86
    %p89 = scmp.ne.s32.totalorder %s72, %s88
    %p90 = scmp.eq.s32.totalorder %s17, 0
    %p91 = por %p89, %p90
    %s92 = ssub.s32 %s11, %s18
    %p93 = scmp.eq.s32.totalorder %s92, 0
    %s95 = sadd.s32 %s94, 1
    %s96 = scalar_select %p93, %s94, %s95
    %p99 = pneg %p93
    %p100 = scmp.eq.s32.totalorder %s11, 1
    %p101 = por %p99, %p100
    %p102 = scmp.ne.s32.totalorder %s94, %s97
    %p103 = scmp.eq.s32.totalorder %s11, 0
    %p104 = por %p102, %p103
    %p105 = scmp.ne.s32.totalorder %s94, %s97
    %p106 = scmp.eq.s32.totalorder %s16, 1
    %p107 = por %p105, %p106
    %p108 = scmp.ne.s32.totalorder %s97, %s98
    %p109 = scmp.eq.s32.totalorder %s16, 0
    %p110 = por %p108, %p109
    %p111 = scmp.ne.s32.totalorder %s97, %s98
    %p112 = scmp.eq.s32.totalorder %s17, 1
    %p113 = por %p111, %p112
    %p115 = scmp.ne.s32.totalorder %s98, %s114
    %p116 = scmp.eq.s32.totalorder %s17, 0
    %p117 = por %p115, %p116
    %s118 = ssub.s32 %s11, %s18
    %p119 = scmp.eq.s32.totalorder %s118, 0
    %s121 = sadd.s32 %s120, 1
    %s122 = scalar_select %p119, %s120, %s121
    %p125 = pneg %p119
    %p126 = scmp.eq.s32.totalorder %s11, 1
    %p127 = por %p125, %p126
    %p128 = scmp.ne.s32.totalorder %s120, %s123
    %p129 = scmp.eq.s32.totalorder %s11, 0
    %p130 = por %p128, %p129
    %p131 = scmp.ne.s32.totalorder %s120, %s123
    %p132 = scmp.eq.s32.totalorder %s16, 1
    %p133 = por %p131, %p132
    %p134 = scmp.ne.s32.totalorder %s123, %s124
    %p135 = scmp.eq.s32.totalorder %s16, 0
    %p136 = por %p134, %p135
    %p137 = scmp.ne.s32.totalorder %s123, %s124
    %p138 = scmp.eq.s32.totalorder %s17, 1
    %p139 = por %p137, %p138
    %p141 = scmp.ne.s32.totalorder %s124, %s140
    %p142 = scmp.eq.s32.totalorder %s17, 0
    %p143 = por %p141, %p142
    %p144 = scmp.le.s32.totalorder 1, %s11
    %p145 = scmp.lt.s32.totalorder %s11, 3
    %p146 = pnand %p144, %p145
    %p147 = pneg %p146
    // Predicated region
    $region9: #{label_reps_transfer.1} parent=5 // pred_check
      _
    $region10: #{label_reps_transfer.1} parent=5 // pred_check_branch
      %149 = sbr.rel (%p146) target = $region12
    $region11: #{label_reps_transfer.1} parent=5 // pred_region
      %s150 = ssub.s32 %s11, 1
      // Predicated region
      $region13: #{label_reps_transfer.1} parent=11 // pred_check
        %p151 = pneg %p58
      $region14: #{label_reps_transfer.1} parent=11 // pred_check_branch
        %153 = sbr.rel (%p151) target = $region16
      $region15: #{label_reps_transfer.1} parent=11 // pred_region
        _
      $region16: #{label_reps_transfer.1} parent=11 // pred_fallthru
        _
    $region12: #{label_reps_transfer.1} parent=5 // pred_fallthru
      _
    %p154 = scmp.lt.s32.totalorder %s11, 2
    // Predicated region
    $region17: #{label_reps_transfer.1} parent=5 // pred_check
      %p155 = pneg %p154
    $region18: #{label_reps_transfer.1} parent=5 // pred_check_branch
      %157 = sbr.rel (%p155) target = $region20
    $region19: #{label_reps_transfer.1} parent=5 // pred_region
      // Predicated region
      $region21: #{label_reps_transfer.1} parent=19 // pred_check
        %p158 = pneg %p31
      $region22: #{label_reps_transfer.1} parent=19 // pred_check_branch
        %160 = sbr.rel (%p158) target = $region24
      $region23: #{label_reps_transfer.1} parent=19 // pred_region
        %p161 = scmp.lt.s32.totalorder %s11, 1
        %s162 = scalar_select %p161, %s11, 1
        %s163 = smul.addr %s162, 8
        %s164 = scalar_lea.vmem %s0, %s163
      $region24: #{label_reps_transfer.1} parent=19 // pred_fallthru
        _
    $region20: #{label_reps_transfer.1} parent=5 // pred_fallthru
      _
    %p165 = scmp.le.s32.totalorder 1, %s11
    %p166 = scmp.lt.s32.totalorder %s11, 3
    %p167 = pnand %p165, %p166
    %p168 = pneg %p167
    // Predicated region
    $region25: #{label_reps_transfer.1} parent=5 // pred_check
      _
    $region26: #{label_reps_transfer.1} parent=5 // pred_check_branch
      %170 = sbr.rel (%p167) target = $region28
    $region27: #{label_reps_transfer.1} parent=5 // pred_region
      %s171 = ssub.s32 %s11, 1
      %p172 = scmp.lt.s32.totalorder %s16, 1
      %s173 = scalar_select %p172, %s16, 1
      %s174 = smul.addr %s173, 8
      %s175 = scalar_lea.vmem %s0, %s174
      %p176 = pneg %p37
      %p177 = pneg %p34
      %p178 = pneg %p58
      %p179 = pneg %p55
      %p180 = pneg %p84
      %p181 = pneg %p81
      %p182 = scmp.lt.s32.totalorder %s16, 1
      %s183 = scalar_select %p182, %s16, 1
      %s184 = smul.addr %s183, 8
      %s185 = scalar_lea.vmem %s2, %s184
      %p186 = pneg %p110
      %p187 = pneg %p107
      %p188 = scmp.lt.s32.totalorder %s16, 1
      %s189 = scalar_select %p188, %s16, 1
      %s190 = smul.addr %s189, 8
      %s191 = scalar_lea.vmem %s3, %s190
      %p192 = pneg %p136
      %p193 = pneg %p133
      %p194 = scmp.lt.s32.totalorder %s16, 1
      %s195 = scalar_select %p194, %s16, 1
      %s196 = smul.addr %s195, 8
      %s197 = scalar_lea.vmem %s4, %s196
      %p198 = scmp.lt.s32.totalorder %s16, 1
      %s199 = scalar_select %p198, %s16, 1
      %s200 = smul.addr %s199, 8
      %s201 = scalar_lea.vmem %s0, %s200
      %p202 = scmp.lt.s32.totalorder %s16, 1
      %s203 = scalar_select %p202, %s16, 1
      %s204 = smul.addr %s203, 8
      %s205 = scalar_lea.vmem %s2, %s204
      %p206 = scmp.lt.s32.totalorder %s16, 1
      %s207 = scalar_select %p206, %s16, 1
      %s208 = smul.addr %s207, 8
      %s209 = scalar_lea.vmem %s3, %s208
      %p210 = scmp.lt.s32.totalorder %s16, 1
      %s211 = scalar_select %p210, %s16, 1
      %s212 = smul.addr %s211, 8
      %s213 = scalar_lea.vmem %s4, %s212
      %v214 = vld [vmem:[%s201] sm:$0xff]
      %v215 = vld [vmem:[%s1] sm:$0xff]
      %v216 = vld [vmem:[%s1 + $0x8] sm:$0xff]
      %v217 = vld [vmem:[%s1 + $0x10] sm:$0xff]
      %v218 = vld [vmem:[%s1 + $0x18] sm:$0xff]
      %v219 = vld [vmem:[%s1 + $0x20] sm:$0xff]
      %v220 = vld [vmem:[%s1 + $0x28] sm:$0xff]
      %v221 = vld [vmem:[%s1 + $0x30] sm:$0xff]
      %v222 = vld [vmem:[%s1 + $0x38] sm:$0xff]
      %v223 = vld [vmem:[%s1 + $0x40] sm:$0xff]
      %v224 = vld [vmem:[%s1 + $0x48] sm:$0xff]
      %v225 = vld [vmem:[%s1 + $0x50] sm:$0xff]
      %v226 = vld [vmem:[%s1 + $0x58] sm:$0xff]
      %v227 = vld [vmem:[%s1 + $0x60] sm:$0xff]
      %v228 = vld [vmem:[%s1 + $0x68] sm:$0xff]
      %v229 = vld [vmem:[%s1 + $0x70] sm:$0xff]
      %v230 = vld [vmem:[%s1 + $0x78] sm:$0xff]
      %v231 = vld [vmem:[%s1 + $0x80] sm:$0xff]
      %v232 = vld [vmem:[%s1 + $0x88] sm:$0xff]
      %v233 = vld [vmem:[%s1 + $0x90] sm:$0xff]
      %v234 = vld [vmem:[%s1 + $0x98] sm:$0xff]
      %v235 = vld [vmem:[%s1 + $0xa0] sm:$0xff]
      %v236 = vld [vmem:[%s1 + $0xa8] sm:$0xff]
      %v237 = vld [vmem:[%s1 + $0xb0] sm:$0xff]
      %v238 = vld [vmem:[%s1 + $0xb8] sm:$0xff]
      %v239 = vld [vmem:[%s1 + $0xc0] sm:$0xff]
      %v240 = vld [vmem:[%s1 + $0xc8] sm:$0xff]
      %v241 = vld [vmem:[%s1 + $0xd0] sm:$0xff]
      %v242 = vld [vmem:[%s1 + $0xd8] sm:$0xff]
      %v243 = vld [vmem:[%s1 + $0xe0] sm:$0xff]
      %v244 = vld [vmem:[%s1 + $0xe8] sm:$0xff]
      %v245 = vld [vmem:[%s1 + $0xf0] sm:$0xff]
      %v246 = vld [vmem:[%s1 + $0xf8] sm:$0xff]
      %v247 = vld [vmem:[%s1 + $0x100] sm:$0xff]
      %v248 = vld [vmem:[%s1 + $0x108] sm:$0xff]
      %v249 = vld [vmem:[%s1 + $0x110] sm:$0xff]
      %v250 = vld [vmem:[%s1 + $0x118] sm:$0xff]
      %v251 = vld [vmem:[%s1 + $0x120] sm:$0xff]
      %v252 = vld [vmem:[%s1 + $0x128] sm:$0xff]
      %v253 = vld [vmem:[%s1 + $0x130] sm:$0xff]
      %v254 = vld [vmem:[%s1 + $0x138] sm:$0xff]
      %v255 = vld [vmem:[%s1 + $0x140] sm:$0xff]
      %v256 = vld [vmem:[%s1 + $0x148] sm:$0xff]
      %v257 = vld [vmem:[%s1 + $0x150] sm:$0xff]
      %v258 = vld [vmem:[%s1 + $0x158] sm:$0xff]
      %v259 = vld [vmem:[%s1 + $0x160] sm:$0xff]
      %v260 = vld [vmem:[%s1 + $0x168] sm:$0xff]
      %v261 = vld [vmem:[%s1 + $0x170] sm:$0xff]
      %v262 = vld [vmem:[%s1 + $0x178] sm:$0xff]
      %263 = vmatpush.msra.mxu0 %v260
      %264 = vmatpush.msra.mxu0 %v257
      %265 = vmatpush.msra.mxu0 %v254
      %266 = vmatpush.msra.mxu0 %v251
      %267 = vmatpush.msra.mxu0 %v248
      %268 = vmatpush.msra.mxu0 %v245
      %269 = vmatpush.msra.mxu0 %v242
      %270 = vmatpush.msra.mxu0 %v239
      %271 = vmatpush.msra.mxu0 %v236
      %272 = vmatpush.msra.mxu0 %v233
      %273 = vmatpush.msra.mxu0 %v230
      %274 = vmatpush.msra.mxu0 %v227
      %275 = vmatpush.msra.mxu0 %v224
      %276 = vmatpush.msra.mxu0 %v221
      %277 = vmatpush.msra.mxu0 %v218
      %278 = vmatpush.msra.mxu0 %v215
      %279 = vmatmul.f32.gmra.mxu0 %v214
      %v280 = vpop.f32.mrf.mxu0
      %v281 = vadd.f32 0.0, %v280
      %282 = vdwg.mxu0
      %283 = vmatpush.msra.mxu0 %v261
      %284 = vmatpush.msra.mxu0 %v258
      %285 = vmatpush.msra.mxu0 %v255
      %286 = vmatpush.msra.mxu0 %v252
      %287 = vmatpush.msra.mxu0 %v249
      %288 = vmatpush.msra.mxu0 %v246
      %289 = vmatpush.msra.mxu0 %v243
      %290 = vmatpush.msra.mxu0 %v240
      %291 = vmatpush.msra.mxu0 %v237
      %292 = vmatpush.msra.mxu0 %v234
      %293 = vmatpush.msra.mxu0 %v231
      %294 = vmatpush.msra.mxu0 %v228
      %295 = vmatpush.msra.mxu0 %v225
      %296 = vmatpush.msra.mxu0 %v222
      %297 = vmatpush.msra.mxu0 %v219
      %298 = vmatpush.msra.mxu0 %v216
      %299 = vmatmul.f32.gmra.mxu0 %v214
      %v300 = vpop.f32.mrf.mxu0
      %v301 = vadd.f32 0.0, %v300
      %302 = vdwg.mxu0
      %303 = vmatpush.msra.mxu0 %v262
      %304 = vmatpush.msra.mxu0 %v259
      %305 = vmatpush.msra.mxu0 %v256
      %306 = vmatpush.msra.mxu0 %v253
      %307 = vmatpush.msra.mxu0 %v250
      %308 = vmatpush.msra.mxu0 %v247
      %309 = vmatpush.msra.mxu0 %v244
      %310 = vmatpush.msra.mxu0 %v241
      %311 = vmatpush.msra.mxu0 %v238
      %312 = vmatpush.msra.mxu0 %v235
      %313 = vmatpush.msra.mxu0 %v232
      %314 = vmatpush.msra.mxu0 %v229
      %315 = vmatpush.msra.mxu0 %v226
      %316 = vmatpush.msra.mxu0 %v223
      %317 = vmatpush.msra.mxu0 %v220
      %318 = vmatpush.msra.mxu0 %v217
      %319 = vmatmul.f32.gmra.mxu0 %v214
      %v320 = vpop.f32.mrf.mxu0
      %v321 = vadd.f32 0.0, %v320
      %322 = vdwg.mxu0
      %323 = vst [vmem:[%s205] sm:$0xff] %v281
      %324 = vst [vmem:[%s209] sm:$0xff] %v301
      %325 = vst [vmem:[%s213] sm:$0xff] %v321
      %p326 = scmp.lt.s32.totalorder %s16, 1
      %s327 = scalar_select %p326, %s16, 1
      %s328 = smul.addr %s327, 8
      %s329 = scalar_lea.vmem %s2, %s328
      %p330 = scmp.lt.s32.totalorder %s16, 1
      %s331 = scalar_select %p330, %s16, 1
      %s332 = smul.addr %s331, 8
      %s333 = scalar_lea.vmem %s3, %s332
      %p334 = scmp.lt.s32.totalorder %s16, 1
      %s335 = scalar_select %p334, %s16, 1
      %s336 = smul.addr %s335, 8
      %s337 = scalar_lea.vmem %s4, %s336
      // Predicated region
      $region29: #{label_reps_transfer.1} parent=27 // pred_check
        %p338 = pneg %p81
      $region30: #{label_reps_transfer.1} parent=27 // pred_check_branch
        %340 = sbr.rel (%p338) target = $region32
      $region31: #{label_reps_transfer.1} parent=27 // pred_region
        _
      $region32: #{label_reps_transfer.1} parent=27 // pred_fallthru
        _
      // Predicated region
      $region33: #{label_reps_transfer.1} parent=27 // pred_check
        %p341 = pneg %p107
      $region34: #{label_reps_transfer.1} parent=27 // pred_check_branch
        %343 = sbr.rel (%p341) target = $region36
      $region35: #{label_reps_transfer.1} parent=27 // pred_region
        _
      $region36: #{label_reps_transfer.1} parent=27 // pred_fallthru
        _
      // Predicated region
      $region37: #{label_reps_transfer.1} parent=27 // pred_check
        %p344 = pneg %p133
      $region38: #{label_reps_transfer.1} parent=27 // pred_check_branch
        %346 = sbr.rel (%p344) target = $region40
      $region39: #{label_reps_transfer.1} parent=27 // pred_region
        _
      $region40: #{label_reps_transfer.1} parent=27 // pred_fallthru
        _
    $region28: #{label_reps_transfer.1} parent=5 // pred_fallthru
      _
    %p347 = scmp.le.s32.totalorder 2, %s11
    // Predicated region
    $region41: #{label_reps_transfer.1} parent=5 // pred_check
      %p348 = pneg %p347
    $region42: #{label_reps_transfer.1} parent=5 // pred_check_branch
      %350 = sbr.rel (%p348) target = $region44
    $region43: #{label_reps_transfer.1} parent=5 // pred_region
      %s351 = ssub.s32 %s11, 2
      // Predicated region
      $region45: #{label_reps_transfer.1} parent=43 // pred_check
        %p352 = pneg %p87
      $region46: #{label_reps_transfer.1} parent=43 // pred_check_branch
        %354 = sbr.rel (%p352) target = $region48
      $region47: #{label_reps_transfer.1} parent=43 // pred_region
        %p355 = scmp.lt.s32.totalorder %s17, 1
        %s356 = scalar_select %p355, %s17, 1
        %s357 = smul.addr %s356, 8
        %s358 = scalar_lea.vmem %s2, %s357
      $region48: #{label_reps_transfer.1} parent=43 // pred_fallthru
        _
      // Predicated region
      $region49: #{label_reps_transfer.1} parent=43 // pred_check
        %p359 = pneg %p113
      $region50: #{label_reps_transfer.1} parent=43 // pred_check_branch
        %361 = sbr.rel (%p359) target = $region52
      $region51: #{label_reps_transfer.1} parent=43 // pred_region
        %p362 = scmp.lt.s32.totalorder %s17, 1
        %s363 = scalar_select %p362, %s17, 1
        %s364 = smul.addr %s363, 8
        %s365 = scalar_lea.vmem %s3, %s364
      $region52: #{label_reps_transfer.1} parent=43 // pred_fallthru
        _
      // Predicated region
      $region53: #{label_reps_transfer.1} parent=43 // pred_check
        %p366 = pneg %p139
      $region54: #{label_reps_transfer.1} parent=43 // pred_check_branch
        %368 = sbr.rel (%p366) target = $region56
      $region55: #{label_reps_transfer.1} parent=43 // pred_region
        %p369 = scmp.lt.s32.totalorder %s17, 1
        %s370 = scalar_select %p369, %s17, 1
        %s371 = smul.addr %s370, 8
        %s372 = scalar_lea.vmem %s4, %s371
      $region56: #{label_reps_transfer.1} parent=43 // pred_fallthru
        _
    $region44: #{label_reps_transfer.1} parent=5 // pred_fallthru
      _
  $region6: #{label_reps_transfer.1} parent=0 // loop_footer
    %s15 = sadd.s32 1, %s11
  $region7: #{label_reps_transfer.1} parent=0 // loop_footer_branch
    %10 = sbr.rel target = $region3
  $region8: #{label_reps_transfer.1} parent=0 // loop_exit
    _

</llo_original>
